<compile_context>
chip_gen: v5e
topology: v5e:2x2
jax: 0.10.0
libtpu: 0.0.40
codegen_flags: <defaults>
</compile_context>

<pallas_src>
import jax
import jax.numpy as jnp
from jax.experimental import pallas as pl
from jax.experimental.pallas import tpu as pltpu


def _pick_images_per_step(n, hwp, max_lanes=2048):
    """Largest divisor of n such that (divisor * Hp*Wp) stays lane-friendly."""
    best = 1
    for d in range(1, n + 1):
        if n % d == 0 and d * hwp <= max(max_lanes, hwp):
            best = d
    return best


def _pool_select_matrix(nb, H, W):
    """(NB*H*W, NB*Hp*Wp) 0/1 matrix picking the top-left lane of each 2x2 block."""
    Hp, Wp = H // 2, W // 2
    L_out = nb * Hp * Wp
    j = jnp.arange(L_out)
    img = j // (Hp * Wp)
    rem = j % (Hp * Wp)
    hp, wp = rem // Wp, rem % Wp
    src = img * (H * W) + (2 * hp) * W + (2 * wp)
    rows = jnp.arange(nb * H * W)[:, None]
    return (rows == src[None, :]).astype(jnp.float32)


def _tap_masks(nb, Hp, Wp):
    """(9, 1, NB*Hp*Wp) validity masks for the nine 3x3 taps (zero padding +
    no bleed across rows / images when rolling the flattened lane axis)."""
    L = nb * Hp * Wp
    k = jnp.arange(L)
    w = k % Wp
    h = (k // Wp) % Hp
    masks = []
    for dh in (-1, 0, 1):
        for dw in (-1, 0, 1):
            valid = (h + dh >= 0) & (h + dh < Hp) & (w + dw >= 0) & (w + dw < Wp)
            masks.append(valid.astype(jnp.float32))
    return jnp.stack(masks).reshape(9, 1, L)


def down_forward(x,
                 conv1_w, conv1_b, bn1_gamma, bn1_beta, bn1_mean, bn1_var,
                 conv2_w, conv2_b, bn2_gamma, bn2_beta, bn2_mean, bn2_var,
                 eps=1e-5):
    """Forward of Down(in_channels, out_channels): MaxPool2d(2) -> DoubleConv.

    x       : (N, Cin, H, W)
    conv*_w : (Cout, Cin, 3, 3) PyTorch layout, conv*_b: (Cout,)
    bn*_*   : (Cout,) eval-mode BatchNorm parameters / running statistics
    returns : (N, Cout2, H//2, W//2)
    """
    N, Cin, H, W = x.shape
    assert H % 2 == 0 and W % 2 == 0, "Down requires even spatial dims"
    C1 = conv1_w.shape[0]
    C2 = conv2_w.shape[0]
    Hp, Wp = H // 2, W // 2
    HW, HWp = H * W, Hp * Wp

    # ---- Fold eval-mode BatchNorm into the convolutions ---------------------
    s1 = bn1_gamma / jnp.sqrt(bn1_var + eps)
    w1f = conv1_w * s1[:, None, None, None]
    b1f = (conv1_b - bn1_mean) * s1 + bn1_beta
    s2 = bn2_gamma / jnp.sqrt(bn2_var + eps)
    w2f = conv2_w * s2[:, None, None, None]
    b2f = (conv2_b - bn2_mean) * s2 + bn2_beta

    # im2col-packed weights: column block t = (dh+1)*3 + (dw+1) holds w[:, :, kh, kw].
    w1_packed = jnp.transpose(w1f, (0, 2, 3, 1)).reshape(C1, 9 * Cin)
    w2_packed = jnp.transpose(w2f, (0, 2, 3, 1)).reshape(C2, 9 * C1)
    b1_col = b1f.reshape(C1, 1)
    b2_col = b2f.reshape(C2, 1)

    # ---- Batch grouping: pack NB images along the lane axis ------------------
    NB = _pick_images_per_step(N, HWp)
    G = N // NB
    L_in = NB * HW
    L_out = NB * HWp

    # Tiny constant operands (reused by every grid step).
    S = _pool_select_matrix(NB, H, W)            # (L_in, L_out)  0/1
    M = _tap_masks(NB, Hp, Wp)                   # (9, 1, L_out)  0/1

    # (N,Cin,H,W) -> (G, Cin, NB*H*W): one cheap transpose of a tiny activation.
    x_packed = (x.reshape(G, NB, Cin, HW)
                 .transpose(0, 2, 1, 3)
                 .reshape(G, Cin, L_in))

    def kernel(x_ref, s_ref, m_ref, w1_ref, b1_ref, w2_ref, b2_ref, o_ref):
        # x_ref : (1, Cin, L_in)    NB images packed along lanes (row-major H*W)
        # s_ref : (L_in, L_out)     2x2-block top-left selection matrix
        # m_ref : (9, 1, L_out)     per-tap validity masks
        # w1_ref: (C1, 9*Cin)       im2col-packed folded conv1 weights
        # b1_ref: (C1, 1)
        # w2_ref: (C2, 9*C1)
        # b2_ref: (C2, 1)
        # o_ref : (1, C2, L_out)
        xv = x_ref[0]                                           # (Cin, L_in)

        # ---- MaxPool2d(2): pairwise lane maxes + one 0/1 selection matmul ---
        mh = jnp.maximum(xv, pltpu.roll(xv, shift=(L_in - 1) % L_in, axis=1))
        mv = jnp.maximum(mh, pltpu.roll(mh, shift=(L_in - W) % L_in, axis=1))
        pooled = jnp.dot(mv, s_ref[...],
                         preferred_element_type=jnp.float32)   # (Cin, L_out)

        def conv_bn_relu(a, w_ref, b_ref):
            # a: (c_in, L_out). Build im2col stack (9*c_in, L_out) via rolls.
            L = a.shape[1]
            parts = []
            for t in range(9):
                dh, dw = t // 3 - 1, t % 3 - 1
                delta = dh * Wp + dw
                if delta == 0:
                    parts.append(a)                             # center tap
                else:
                    rolled = pltpu.roll(a, shift=(-delta) % L, axis=1)
                    parts.append(rolled * m_ref[t])             # zero-pad mask
            stacked = jnp.concatenate(parts, axis=0)            # (9*c_in, L)
            z = jnp.dot(w_ref[...], stacked,
                        preferred_element_type=jnp.float32)     # (c_out, L)
            return jnp.maximum(z + b_ref[...], 0.0)

        a1 = conv_bn_relu(pooled, w1_ref, b1_ref)               # (C1, L_out)
        a2 = conv_bn_relu(a1, w2_ref, b2_ref)                   # (C2, L_out)
        o_ref[0] = a2.astype(o_ref.dtype)

    y_flat = pl.pallas_call(
        kernel,
        out_shape=jax.ShapeDtypeStruct((G, C2, L_out), x.dtype),
        grid_spec=pltpu.PrefetchScalarGridSpec(
            num_scalar_prefetch=0,
            grid=(G,),
            in_specs=[
                pl.BlockSpec((1, Cin, L_in), lambda g: (g, 0, 0)),
                pl.BlockSpec((L_in, L_out), lambda g: (0, 0)),
                pl.BlockSpec((9, 1, L_out), lambda g: (0, 0, 0)),
                pl.BlockSpec((C1, 9 * Cin), lambda g: (0, 0)),
                pl.BlockSpec((C1, 1), lambda g: (0, 0)),
                pl.BlockSpec((C2, 9 * C1), lambda g: (0, 0)),
                pl.BlockSpec((C2, 1), lambda g: (0, 0)),
            ],
            out_specs=pl.BlockSpec((1, C2, L_out), lambda g: (g, 0, 0)),
        ),
        compiler_params=pltpu.CompilerParams(
            dimension_semantics=("parallel",)),
    )(x_packed, S, M, w1_packed, b1_col, w2_packed, b2_col)

    # (G, C2, NB*HWp) -> (N, C2, Hp, Wp)
    y = (y_flat.reshape(G, C2, NB, HWp)
               .transpose(0, 2, 1, 3)
               .reshape(N, C2, Hp, Wp))
    return y


if __name__ == "__main__":
    # Down(in_channels=4, out_channels=8) on a (2, 4, 16, 16) input.
    N, Cin, Cout, H, W = 2, 4, 8, 16, 16
    eps = 1e-5

    keys = jax.random.split(jax.random.PRNGKey(0), 13)
    x = jax.random.normal(keys[0], (N, Cin, H, W), dtype=jnp.float32)

    def conv_init(kw_key, kb_key, cout, cin, k):
        bound = 1.0 / (cin * k * k) ** 0.5
        w = jax.random.uniform(kw_key, (cout, cin, k, k), jnp.float32,
                               -bound, bound)
        b = jax.random.uniform(kb_key, (cout,), jnp.float32, -bound, bound)
        return w, b

    w1, b1 = conv_init(keys[1], keys[2], Cout, Cin, 3)
    w2, b2 = conv_init(keys[3], keys[4], Cout, Cout, 3)

    # Eval-mode BatchNorm parameters / running stats (randomized so BN matters).
    g1 = jax.random.uniform(keys[5], (Cout,), jnp.float32, 0.5, 1.5)
    be1 = 0.1 * jax.random.normal(keys[6], (Cout,), dtype=jnp.float32)
    m1 = 0.1 * jax.random.normal(keys[7], (Cout,), dtype=jnp.float32)
    v1 = jax.random.uniform(keys[8], (Cout,), jnp.float32, 0.5, 1.5)
    g2 = jax.random.uniform(keys[9], (Cout,), jnp.float32, 0.5, 1.5)
    be2 = 0.1 * jax.random.normal(keys[10], (Cout,), dtype=jnp.float32)
    m2 = 0.1 * jax.random.normal(keys[11], (Cout,), dtype=jnp.float32)
    v2 = jax.random.uniform(keys[12], (Cout,), jnp.float32, 0.5, 1.5)

    down = jax.jit(down_forward)
    y = down(x, w1, b1, g1, be1, m1, v1, w2, b2, g2, be2, m2, v2)
    y = jax.block_until_ready(y)

    # ---- Pure-JAX reference -------------------------------------------------
    pooled = x.reshape(N, Cin, H // 2, 2, W // 2, 2).max(axis=(3, 5))

    def conv_bn_relu_ref(inp, w, b, g, bt, mu, var):
        out = jax.lax.conv_general_dilated(
            inp, w, window_strides=(1, 1), padding="SAME",
            dimension_numbers=("NCHW", "OIHW", "NCHW"))
        out = out + b[None, :, None, None]
        out = (out - mu[None, :, None, None]) / jnp.sqrt(
            var[None, :, None, None] + eps)
        out = out * g[None, :, None, None] + bt[None, :, None, None]
        return jnp.maximum(out, 0.0)

    y_ref = conv_bn_relu_ref(pooled, w1, b1, g1, be1, m1, v1)
    y_ref = conv_bn_relu_ref(y_ref, w2, b2, g2, be2, m2, v2)

    assert y.shape == (N, Cout, H // 2, W // 2)
    assert jnp.allclose(y, y_ref, atol=1e-4, rtol=1e-4)

    print("KERNEL_OK")
</pallas_src>

<mosaic_0001>
module attributes {stable_mosaic.version = 11 : i64} {
  func.func @kernel(%arg0: i32, %arg1: memref<1x4x512xf32, #tpu.memory_space<vmem>>, %arg2: memref<512x128xf32, #tpu.memory_space<vmem>>, %arg3: memref<9x1x128xf32, #tpu.memory_space<vmem>>, %arg4: memref<8x36xf32, #tpu.memory_space<vmem>>, %arg5: memref<8x1xf32, #tpu.memory_space<vmem>>, %arg6: memref<8x72xf32, #tpu.memory_space<vmem>>, %arg7: memref<8x1xf32, #tpu.memory_space<vmem>>, %arg8: memref<1x8x128xf32, #tpu.memory_space<vmem>>) attributes {dimension_semantics = [#tpu.dimension_semantics<parallel>], iteration_bounds = array<i64: 1>, scalar_prefetch = 0 : i64, scratch_operands = 0 : i64, tpu.core_type = #tpu.core_type<tc>, window_params = [{transform_indices = @transform_0, window_bounds = array<i64: 1, 4, 512>}, {pipeline_mode = #tpu.pipeline_mode<synchronous>, transform_indices = @transform_1, window_bounds = array<i64: 512, 128>}, {pipeline_mode = #tpu.pipeline_mode<synchronous>, transform_indices = @transform_2, window_bounds = array<i64: 9, 1, 128>}, {pipeline_mode = #tpu.pipeline_mode<synchronous>, transform_indices = @transform_3, window_bounds = array<i64: 8, 36>}, {pipeline_mode = #tpu.pipeline_mode<synchronous>, transform_indices = @transform_4, window_bounds = array<i64: 8, 1>}, {pipeline_mode = #tpu.pipeline_mode<synchronous>, transform_indices = @transform_5, window_bounds = array<i64: 8, 72>}, {pipeline_mode = #tpu.pipeline_mode<synchronous>, transform_indices = @transform_6, window_bounds = array<i64: 8, 1>}, {transform_indices = @transform_7, window_bounds = array<i64: 1, 8, 128>}]} {
    %c0 = arith.constant 0 : index
    %c0_0 = arith.constant 0 : index
    %c0_1 = arith.constant 0 : index
    %0 = vector.load %arg1[%c0, %c0_0, %c0_1] : memref<1x4x512xf32, #tpu.memory_space<vmem>>, vector<1x4x512xf32>
    %1 = vector.shape_cast %0 : vector<1x4x512xf32> to vector<4x512xf32>
    %c511_i32 = arith.constant 511 : i32
    %2 = tpu.dynamic_rotate %1 by %c511_i32 dim 1 : vector<4x512xf32>, i32 -> vector<4x512xf32>
    %3 = arith.maximumf %1, %2 : vector<4x512xf32>
    %c496_i32 = arith.constant 496 : i32
    %4 = tpu.dynamic_rotate %3 by %c496_i32 dim 1 : vector<4x512xf32>, i32 -> vector<4x512xf32>
    %5 = arith.maximumf %3, %4 : vector<4x512xf32>
    %c0_2 = arith.constant 0 : index
    %c0_3 = arith.constant 0 : index
    %6 = vector.load %arg2[%c0_2, %c0_3] : memref<512x128xf32, #tpu.memory_space<vmem>>, vector<512x128xf32>
    %cst = arith.constant dense<0.000000e+00> : vector<4x128xf32>
    %7 = tpu.matmul %5, %6, %cst {dimension_numbers = #tpu.dot_dimension_numbers<[1], [0], [0], [1], [0, 0, 1, 1], [], []>} : vector<4x512xf32>, vector<512x128xf32>, vector<4x128xf32> -> vector<4x128xf32>
    %c9_i32 = arith.constant 9 : i32
    %8 = tpu.dynamic_rotate %7 by %c9_i32 dim 1 : vector<4x128xf32>, i32 -> vector<4x128xf32>
    %c0_4 = arith.constant 0 : index
    %c0_5 = arith.constant 0 : index
    %c0_6 = arith.constant 0 : index
    %9 = vector.load %arg3[%c0_4, %c0_5, %c0_6] : memref<9x1x128xf32, #tpu.memory_space<vmem>>, vector<1x1x128xf32>
    %10 = vector.shape_cast %9 : vector<1x1x128xf32> to vector<1x128xf32>
    %11 = vector.broadcast %10 : vector<1x128xf32> to vector<4x128xf32>
    %12 = arith.mulf %8, %11 : vector<4x128xf32>
    %c8_i32 = arith.constant 8 : i32
    %13 = tpu.dynamic_rotate %7 by %c8_i32 dim 1 : vector<4x128xf32>, i32 -> vector<4x128xf32>
    %c1 = arith.constant 1 : index
    %c0_7 = arith.constant 0 : index
    %c0_8 = arith.constant 0 : index
    %14 = vector.load %arg3[%c1, %c0_7, %c0_8] : memref<9x1x128xf32, #tpu.memory_space<vmem>>, vector<1x1x128xf32>
    %15 = vector.shape_cast %14 : vector<1x1x128xf32> to vector<1x128xf32>
    %16 = vector.broadcast %15 : vector<1x128xf32> to vector<4x128xf32>
    %17 = arith.mulf %13, %16 : vector<4x128xf32>
    %c7_i32 = arith.constant 7 : i32
    %18 = tpu.dynamic_rotate %7 by %c7_i32 dim 1 : vector<4x128xf32>, i32 -> vector<4x128xf32>
    %c2 = arith.constant 2 : index
    %c0_9 = arith.constant 0 : index
    %c0_10 = arith.constant 0 : index
    %19 = vector.load %arg3[%c2, %c0_9, %c0_10] : memref<9x1x128xf32, #tpu.memory_space<vmem>>, vector<1x1x128xf32>
    %20 = vector.shape_cast %19 : vector<1x1x128xf32> to vector<1x128xf32>
    %21 = vector.broadcast %20 : vector<1x128xf32> to vector<4x128xf32>
    %22 = arith.mulf %18, %21 : vector<4x128xf32>
    %c1_i32 = arith.constant 1 : i32
    %23 = tpu.dynamic_rotate %7 by %c1_i32 dim 1 : vector<4x128xf32>, i32 -> vector<4x128xf32>
    %c3 = arith.constant 3 : index
    %c0_11 = arith.constant 0 : index
    %c0_12 = arith.constant 0 : index
    %24 = vector.load %arg3[%c3, %c0_11, %c0_12] : memref<9x1x128xf32, #tpu.memory_space<vmem>>, vector<1x1x128xf32>
    %25 = vector.shape_cast %24 : vector<1x1x128xf32> to vector<1x128xf32>
    %26 = vector.broadcast %25 : vector<1x128xf32> to vector<4x128xf32>
    %27 = arith.mulf %23, %26 : vector<4x128xf32>
    %c127_i32 = arith.constant 127 : i32
    %28 = tpu.dynamic_rotate %7 by %c127_i32 dim 1 : vector<4x128xf32>, i32 -> vector<4x128xf32>
    %c5 = arith.constant 5 : index
    %c0_13 = arith.constant 0 : index
    %c0_14 = arith.constant 0 : index
    %29 = vector.load %arg3[%c5, %c0_13, %c0_14] : memref<9x1x128xf32, #tpu.memory_space<vmem>>, vector<1x1x128xf32>
    %30 = vector.shape_cast %29 : vector<1x1x128xf32> to vector<1x128xf32>
    %31 = vector.broadcast %30 : vector<1x128xf32> to vector<4x128xf32>
    %32 = arith.mulf %28, %31 : vector<4x128xf32>
    %c121_i32 = arith.constant 121 : i32
    %33 = tpu.dynamic_rotate %7 by %c121_i32 dim 1 : vector<4x128xf32>, i32 -> vector<4x128xf32>
    %c6 = arith.constant 6 : index
    %c0_15 = arith.constant 0 : index
    %c0_16 = arith.constant 0 : index
    %34 = vector.load %arg3[%c6, %c0_15, %c0_16] : memref<9x1x128xf32, #tpu.memory_space<vmem>>, vector<1x1x128xf32>
    %35 = vector.shape_cast %34 : vector<1x1x128xf32> to vector<1x128xf32>
    %36 = vector.broadcast %35 : vector<1x128xf32> to vector<4x128xf32>
    %37 = arith.mulf %33, %36 : vector<4x128xf32>
    %c120_i32 = arith.constant 120 : i32
    %38 = tpu.dynamic_rotate %7 by %c120_i32 dim 1 : vector<4x128xf32>, i32 -> vector<4x128xf32>
    %c7 = arith.constant 7 : index
    %c0_17 = arith.constant 0 : index
    %c0_18 = arith.constant 0 : index
    %39 = vector.load %arg3[%c7, %c0_17, %c0_18] : memref<9x1x128xf32, #tpu.memory_space<vmem>>, vector<1x1x128xf32>
    %40 = vector.shape_cast %39 : vector<1x1x128xf32> to vector<1x128xf32>
    %41 = vector.broadcast %40 : vector<1x128xf32> to vector<4x128xf32>
    %42 = arith.mulf %38, %41 : vector<4x128xf32>
    %c119_i32 = arith.constant 119 : i32
    %43 = tpu.dynamic_rotate %7 by %c119_i32 dim 1 : vector<4x128xf32>, i32 -> vector<4x128xf32>
    %c8 = arith.constant 8 : index
    %c0_19 = arith.constant 0 : index
    %c0_20 = arith.constant 0 : index
    %44 = vector.load %arg3[%c8, %c0_19, %c0_20] : memref<9x1x128xf32, #tpu.memory_space<vmem>>, vector<1x1x128xf32>
    %45 = vector.shape_cast %44 : vector<1x1x128xf32> to vector<1x128xf32>
    %46 = vector.broadcast %45 : vector<1x128xf32> to vector<4x128xf32>
    %47 = arith.mulf %43, %46 : vector<4x128xf32>
    %48 = tpu.concatenate %12, %17, %22, %27, %7, %32, %37, %42, %47 in 0 : vector<4x128xf32>, vector<4x128xf32>, vector<4x128xf32>, vector<4x128xf32>, vector<4x128xf32>, vector<4x128xf32>, vector<4x128xf32>, vector<4x128xf32>, vector<4x128xf32> -> vector<36x128xf32>
    %c0_21 = arith.constant 0 : index
    %c0_22 = arith.constant 0 : index
    %49 = vector.load %arg4[%c0_21, %c0_22] : memref<8x36xf32, #tpu.memory_space<vmem>>, vector<8x36xf32>
    %cst_23 = arith.constant dense<0.000000e+00> : vector<8x128xf32>
    %50 = tpu.matmul %49, %48, %cst_23 {dimension_numbers = #tpu.dot_dimension_numbers<[1], [0], [0], [1], [0, 0, 1, 1], [], []>} : vector<8x36xf32>, vector<36x128xf32>, vector<8x128xf32> -> vector<8x128xf32>
    %c0_24 = arith.constant 0 : index
    %c0_25 = arith.constant 0 : index
    %51 = vector.load %arg5[%c0_24, %c0_25] : memref<8x1xf32, #tpu.memory_space<vmem>>, vector<8x1xf32>
    %52 = vector.broadcast %51 : vector<8x1xf32> to vector<8x128xf32>
    %53 = arith.addf %50, %52 : vector<8x128xf32>
    %cst_26 = arith.constant 0.000000e+00 : f32
    %54 = vector.broadcast %cst_26 : f32 to vector<8x128xf32>
    %55 = arith.maximumf %53, %54 : vector<8x128xf32>
    %c9_i32_27 = arith.constant 9 : i32
    %56 = tpu.dynamic_rotate %55 by %c9_i32_27 dim 1 : vector<8x128xf32>, i32 -> vector<8x128xf32>
    %c0_28 = arith.constant 0 : index
    %c0_29 = arith.constant 0 : index
    %c0_30 = arith.constant 0 : index
    %57 = vector.load %arg3[%c0_28, %c0_29, %c0_30] : memref<9x1x128xf32, #tpu.memory_space<vmem>>, vector<1x1x128xf32>
    %58 = vector.shape_cast %57 : vector<1x1x128xf32> to vector<1x128xf32>
    %59 = vector.broadcast %58 : vector<1x128xf32> to vector<8x128xf32>
    %60 = arith.mulf %56, %59 : vector<8x128xf32>
    %c8_i32_31 = arith.constant 8 : i32
    %61 = tpu.dynamic_rotate %55 by %c8_i32_31 dim 1 : vector<8x128xf32>, i32 -> vector<8x128xf32>
    %c1_32 = arith.constant 1 : index
    %c0_33 = arith.constant 0 : index
    %c0_34 = arith.constant 0 : index
    %62 = vector.load %arg3[%c1_32, %c0_33, %c0_34] : memref<9x1x128xf32, #tpu.memory_space<vmem>>, vector<1x1x128xf32>
    %63 = vector.shape_cast %62 : vector<1x1x128xf32> to vector<1x128xf32>
    %64 = vector.broadcast %63 : vector<1x128xf32> to vector<8x128xf32>
    %65 = arith.mulf %61, %64 : vector<8x128xf32>
    %c7_i32_35 = arith.constant 7 : i32
    %66 = tpu.dynamic_rotate %55 by %c7_i32_35 dim 1 : vector<8x128xf32>, i32 -> vector<8x128xf32>
    %c2_36 = arith.constant 2 : index
    %c0_37 = arith.constant 0 : index
    %c0_38 = arith.constant 0 : index
    %67 = vector.load %arg3[%c2_36, %c0_37, %c0_38] : memref<9x1x128xf32, #tpu.memory_space<vmem>>, vector<1x1x128xf32>
    %68 = vector.shape_cast %67 : vector<1x1x128xf32> to vector<1x128xf32>
    %69 = vector.broadcast %68 : vector<1x128xf32> to vector<8x128xf32>
    %70 = arith.mulf %66, %69 : vector<8x128xf32>
    %c1_i32_39 = arith.constant 1 : i32
    %71 = tpu.dynamic_rotate %55 by %c1_i32_39 dim 1 : vector<8x128xf32>, i32 -> vector<8x128xf32>
    %c3_40 = arith.constant 3 : index
    %c0_41 = arith.constant 0 : index
    %c0_42 = arith.constant 0 : index
    %72 = vector.load %arg3[%c3_40, %c0_41, %c0_42] : memref<9x1x128xf32, #tpu.memory_space<vmem>>, vector<1x1x128xf32>
    %73 = vector.shape_cast %72 : vector<1x1x128xf32> to vector<1x128xf32>
    %74 = vector.broadcast %73 : vector<1x128xf32> to vector<8x128xf32>
    %75 = arith.mulf %71, %74 : vector<8x128xf32>
    %c127_i32_43 = arith.constant 127 : i32
    %76 = tpu.dynamic_rotate %55 by %c127_i32_43 dim 1 : vector<8x128xf32>, i32 -> vector<8x128xf32>
    %c5_44 = arith.constant 5 : index
    %c0_45 = arith.constant 0 : index
    %c0_46 = arith.constant 0 : index
    %77 = vector.load %arg3[%c5_44, %c0_45, %c0_46] : memref<9x1x128xf32, #tpu.memory_space<vmem>>, vector<1x1x128xf32>
    %78 = vector.shape_cast %77 : vector<1x1x128xf32> to vector<1x128xf32>
    %79 = vector.broadcast %78 : vector<1x128xf32> to vector<8x128xf32>
    %80 = arith.mulf %76, %79 : vector<8x128xf32>
    %c121_i32_47 = arith.constant 121 : i32
    %81 = tpu.dynamic_rotate %55 by %c121_i32_47 dim 1 : vector<8x128xf32>, i32 -> vector<8x128xf32>
    %c6_48 = arith.constant 6 : index
    %c0_49 = arith.constant 0 : index
    %c0_50 = arith.constant 0 : index
    %82 = vector.load %arg3[%c6_48, %c0_49, %c0_50] : memref<9x1x128xf32, #tpu.memory_space<vmem>>, vector<1x1x128xf32>
    %83 = vector.shape_cast %82 : vector<1x1x128xf32> to vector<1x128xf32>
    %84 = vector.broadcast %83 : vector<1x128xf32> to vector<8x128xf32>
    %85 = arith.mulf %81, %84 : vector<8x128xf32>
    %c120_i32_51 = arith.constant 120 : i32
    %86 = tpu.dynamic_rotate %55 by %c120_i32_51 dim 1 : vector<8x128xf32>, i32 -> vector<8x128xf32>
    %c7_52 = arith.constant 7 : index
    %c0_53 = arith.constant 0 : index
    %c0_54 = arith.constant 0 : index
    %87 = vector.load %arg3[%c7_52, %c0_53, %c0_54] : memref<9x1x128xf32, #tpu.memory_space<vmem>>, vector<1x1x128xf32>
    %88 = vector.shape_cast %87 : vector<1x1x128xf32> to vector<1x128xf32>
    %89 = vector.broadcast %88 : vector<1x128xf32> to vector<8x128xf32>
    %90 = arith.mulf %86, %89 : vector<8x128xf32>
    %c119_i32_55 = arith.constant 119 : i32
    %91 = tpu.dynamic_rotate %55 by %c119_i32_55 dim 1 : vector<8x128xf32>, i32 -> vector<8x128xf32>
    %c8_56 = arith.constant 8 : index
    %c0_57 = arith.constant 0 : index
    %c0_58 = arith.constant 0 : index
    %92 = vector.load %arg3[%c8_56, %c0_57, %c0_58] : memref<9x1x128xf32, #tpu.memory_space<vmem>>, vector<1x1x128xf32>
    %93 = vector.shape_cast %92 : vector<1x1x128xf32> to vector<1x128xf32>
    %94 = vector.broadcast %93 : vector<1x128xf32> to vector<8x128xf32>
    %95 = arith.mulf %91, %94 : vector<8x128xf32>
    %96 = tpu.concatenate %60, %65, %70, %75, %55, %80, %85, %90, %95 in 0 : vector<8x128xf32>, vector<8x128xf32>, vector<8x128xf32>, vector<8x128xf32>, vector<8x128xf32>, vector<8x128xf32>, vector<8x128xf32>, vector<8x128xf32>, vector<8x128xf32> -> vector<72x128xf32>
    %c0_59 = arith.constant 0 : index
    %c0_60 = arith.constant 0 : index
    %97 = vector.load %arg6[%c0_59, %c0_60] : memref<8x72xf32, #tpu.memory_space<vmem>>, vector<8x72xf32>
    %cst_61 = arith.constant dense<0.000000e+00> : vector<8x128xf32>
    %98 = tpu.matmul %97, %96, %cst_61 {dimension_numbers = #tpu.dot_dimension_numbers<[1], [0], [0], [1], [0, 0, 1, 1], [], []>} : vector<8x72xf32>, vector<72x128xf32>, vector<8x128xf32> -> vector<8x128xf32>
    %c0_62 = arith.constant 0 : index
    %c0_63 = arith.constant 0 : index
    %99 = vector.load %arg7[%c0_62, %c0_63] : memref<8x1xf32, #tpu.memory_space<vmem>>, vector<8x1xf32>
    %100 = vector.broadcast %99 : vector<8x1xf32> to vector<8x128xf32>
    %101 = arith.addf %98, %100 : vector<8x128xf32>
    %cst_64 = arith.constant 0.000000e+00 : f32
    %102 = vector.broadcast %cst_64 : f32 to vector<8x128xf32>
    %103 = arith.maximumf %101, %102 : vector<8x128xf32>
    %c0_65 = arith.constant 0 : index
    %c0_66 = arith.constant 0 : index
    %c0_67 = arith.constant 0 : index
    %104 = vector.load %arg8[%c0_65, %c0_66, %c0_67] : memref<1x8x128xf32, #tpu.memory_space<vmem>>, vector<1x8x128xf32>
    %105 = vector.shape_cast %104 : vector<1x8x128xf32> to vector<8x128xf32>
    %106 = vector.shape_cast %103 : vector<8x128xf32> to vector<1x8x128xf32>
    tpu.vector_store %arg8[%c0_65, %c0_66, %c0_67], %106 {strides = array<i32>} : memref<1x8x128xf32, #tpu.memory_space<vmem>>, vector<1x8x128xf32>,
    return
  }
  func.func @transform_0(%arg0: i32) -> (i32, i32, i32) {
    %c0_i32 = arith.constant 0 : i32
    %c0_i32_0 = arith.constant 0 : i32
    %c0_i32_1 = arith.constant 0 : i32
    return %arg0, %c0_i32, %c0_i32_0 : i32, i32, i32
  }
  func.func @transform_1(%arg0: i32) -> (i32, i32) {
    %c0_i32 = arith.constant 0 : i32
    %c0_i32_0 = arith.constant 0 : i32
    %c0_i32_1 = arith.constant 0 : i32
    return %c0_i32, %c0_i32_0 : i32, i32
  }
  func.func @transform_2(%arg0: i32) -> (i32, i32, i32) {
    %c0_i32 = arith.constant 0 : i32
    %c0_i32_0 = arith.constant 0 : i32
    %c0_i32_1 = arith.constant 0 : i32
    %c0_i32_2 = arith.constant 0 : i32
    return %c0_i32, %c0_i32_0, %c0_i32_1 : i32, i32, i32
  }
  func.func @transform_3(%arg0: i32) -> (i32, i32) {
    %c0_i32 = arith.constant 0 : i32
    %c0_i32_0 = arith.constant 0 : i32
    %c0_i32_1 = arith.constant 0 : i32
    return %c0_i32, %c0_i32_0 : i32, i32
  }
  func.func @transform_4(%arg0: i32) -> (i32, i32) {
    %c0_i32 = arith.constant 0 : i32
    %c0_i32_0 = arith.constant 0 : i32
    %c0_i32_1 = arith.constant 0 : i32
    return %c0_i32, %c0_i32_0 : i32, i32
  }
  func.func @transform_5(%arg0: i32) -> (i32, i32) {
    %c0_i32 = arith.constant 0 : i32
    %c0_i32_0 = arith.constant 0 : i32
    %c0_i32_1 = arith.constant 0 : i32
    return %c0_i32, %c0_i32_0 : i32, i32
  }
  func.func @transform_6(%arg0: i32) -> (i32, i32) {
    %c0_i32 = arith.constant 0 : i32
    %c0_i32_0 = arith.constant 0 : i32
    %c0_i32_1 = arith.constant 0 : i32
    return %c0_i32, %c0_i32_0 : i32, i32
  }
  func.func @transform_7(%arg0: i32) -> (i32, i32, i32) {
    %c0_i32 = arith.constant 0 : i32
    %c0_i32_0 = arith.constant 0 : i32
    %c0_i32_1 = arith.constant 0 : i32
    return %arg0, %c0_i32, %c0_i32_0 : i32, i32, i32
  }
}

</mosaic_0001>

<llo_original>
// kernel: down_forward.1
$region0: #{down_forward.1}
  #allocation0 [shape = 'u32[]', space=smem, size = 0x4, offset = 0x4, fixed_abs, tag = 'smem constant byte address 0x4 - core index']
  #allocation1 [shape = 'u32[72,128]{1,0:T(1,128)}', space=vmem, size = 0x9000, scoped, tag = 'internal scratch']
  %s0 = inlined_call_operand.vmem [shape: f32[1,4,512], index: 0, kind: input, shape index: {}]
  %s1 = inlined_call_operand.vmem [shape: f32[512,128], index: 1, kind: input, shape index: {}]
  %s2 = inlined_call_operand.vmem [shape: f32[9,1,128], index: 2, kind: input, shape index: {}]
  %s3 = inlined_call_operand.vmem [shape: f32[8,36], index: 3, kind: input, shape index: {}]
  %s4 = inlined_call_operand.vmem [shape: f32[8,1], index: 4, kind: input, shape index: {}]
  %s5 = inlined_call_operand.vmem [shape: f32[8,72], index: 5, kind: input, shape index: {}]
  %s6 = inlined_call_operand.vmem [shape: f32[8,1], index: 6, kind: input, shape index: {}]
  %s7 = inlined_call_operand.vmem [shape: f32[1,8,128], index: 7, kind: output, shape index: {}]
  %s8 = sld [smem:[#allocation0]]
  $region38: #{down_forward.1} parent=0
    _
  %s10 = ssub.s32 1, %s8
  %s11 = scalar_select 0, %s10, %s8
  // Predicated region
  $region2: #{down_forward.1} parent=0 // pred_check
    _
  $region3: #{down_forward.1} parent=0 // pred_check_branch
    %13 = sbr.rel (0) target = $region5
  $region4: #{down_forward.1} parent=0 // pred_region
    _
  $region5: #{down_forward.1} parent=0 // pred_fallthru
    _
  // Predicated region
  $region6: #{down_forward.1} parent=0 // pred_check
    _
  $region7: #{down_forward.1} parent=0 // pred_check_branch
    %15 = sbr.rel (0) target = $region9
  $region8: #{down_forward.1} parent=0 // pred_region
    _
  $region9: #{down_forward.1} parent=0 // pred_fallthru
    _
  // Predicated region
  $region10: #{down_forward.1} parent=0 // pred_check
    _
  $region11: #{down_forward.1} parent=0 // pred_check_branch
    %17 = sbr.rel (0) target = $region13
  $region12: #{down_forward.1} parent=0 // pred_region
    _
  $region13: #{down_forward.1} parent=0 // pred_fallthru
    _
  // Predicated region
  $region14: #{down_forward.1} parent=0 // pred_check
    _
  $region15: #{down_forward.1} parent=0 // pred_check_branch
    %19 = sbr.rel (0) target = $region17
  $region16: #{down_forward.1} parent=0 // pred_region
    _
  $region17: #{down_forward.1} parent=0 // pred_fallthru
    _
  // Predicated region
  $region18: #{down_forward.1} parent=0 // pred_check
    _
  $region19: #{down_forward.1} parent=0 // pred_check_branch
    %21 = sbr.rel (0) target = $region21
  $region20: #{down_forward.1} parent=0 // pred_region
    _
  $region21: #{down_forward.1} parent=0 // pred_fallthru
    _
  // Predicated region
  $region22: #{down_forward.1} parent=0 // pred_check
    _
  $region23: #{down_forward.1} parent=0 // pred_check_branch
    %23 = sbr.rel (0) target = $region25
  $region24: #{down_forward.1} parent=0 // pred_region
    _
  $region25: #{down_forward.1} parent=0 // pred_fallthru
    _
  // Predicated region
  $region26: #{down_forward.1} parent=0 // pred_check
    _
  $region27: #{down_forward.1} parent=0 // pred_check_branch
    %25 = sbr.rel (0) target = $region29
  $region28: #{down_forward.1} parent=0 // pred_region
    _
  $region29: #{down_forward.1} parent=0 // pred_fallthru
    _
  %v26 = vld [vmem:[%s0] sm:$0xff]
  %v27 = vld [vmem:[%s0 + $0x8] sm:$0xff]
  %30 = vst [vmem:[#allocation1] ss:$2 sm:$0xff] %v26
  %s31 = scalar_lea.vmem [#allocation1], 16
  %32 = vst [vmem:[%s31] ss:$2 sm:$0xff] %v27
  %v33 = vld.sshfl [vmem:[#allocation1] sm:$0xff pattern:$0x75316420]
  %v34 = vld.sshfl [vmem:[#allocation1 + $0x8] sm:$0xff pattern:$0x75316420]
  %v35 = vld.sshfl [vmem:[#allocation1 + $0x10] sm:$0xff pattern:$0x75316420]
  %v36 = vld.sshfl [vmem:[#allocation1 + $0x18] sm:$0xff pattern:$0x75316420]
  %41 = vrot.lane.b32.xlu0 %v33, 127
  %v42 = vpop.permute.xlu0 %41
  %43 = vrot.lane.b32.xlu0 %v34, 127
  %v44 = vpop.permute.xlu0 %43
  %45 = vrot.lane.b32.xlu0 %v35, 127
  %v46 = vpop.permute.xlu0 %45
  %47 = vrot.lane.b32.xlu0 %v36, 127
  %v48 = vpop.permute.xlu0 %47
  %v49 = vlaneseq
  %v50 = vand.u32 %v49, 127
  %vm51 = vcmp.lt.s32.totalorder %v50, 127
  %v52 = vsel %vm51, %v46, %v48
  %v53 = vsel %vm51, %v44, %v46
  %v54 = vsel %vm51, %v42, %v44
  %v55 = vsel %vm51, %v48, %v42
  %v60 = vrot.slane %v53, 4
  %v61 = vrot.slane %v55, 4
  %vm62 = vcmask 1043456
  %v63 = vsel %vm62, %v54, %v60
  %v64 = vsel %vm62, %v52, %v61
  %v67 = vmax.f32 %v26, %v63
  %v68 = vmax.f32 %v27, %v64
  %71 = vst [vmem:[#allocation1] ss:$2 sm:$0xff] %v67
  %s72 = scalar_lea.vmem [#allocation1], 16
  %73 = vst [vmem:[%s72] ss:$2 sm:$0xff] %v68
  %v74 = vld.sshfl [vmem:[#allocation1] sm:$0xff pattern:$0x75316420]
  %v75 = vld.sshfl [vmem:[#allocation1 + $0x8] sm:$0xff pattern:$0x75316420]
  %v76 = vld.sshfl [vmem:[#allocation1 + $0x10] sm:$0xff pattern:$0x75316420]
  %v77 = vld.sshfl [vmem:[#allocation1 + $0x18] sm:$0xff pattern:$0x75316420]
  %82 = vrot.lane.b32.xlu0 %v74, 112
  %v83 = vpop.permute.xlu0 %82
  %84 = vrot.lane.b32.xlu0 %v75, 112
  %v85 = vpop.permute.xlu0 %84
  %86 = vrot.lane.b32.xlu0 %v76, 112
  %v87 = vpop.permute.xlu0 %86
  %88 = vrot.lane.b32.xlu0 %v77, 112
  %v89 = vpop.permute.xlu0 %88
  %vm90 = vcmp.lt.s32.totalorder %v50, 112
  %v91 = vsel %vm90, %v87, %v89
  %v92 = vsel %vm90, %v85, %v87
  %v93 = vsel %vm90, %v83, %v85
  %v94 = vsel %vm90, %v89, %v83
  %v99 = vrot.slane %v92, 4
  %v100 = vrot.slane %v94, 4
  %v101 = vsel %vm62, %v93, %v99
  %v102 = vsel %vm62, %v91, %v100
  %v105 = vmax.f32 %v67, %v101
  %v106 = vmax.f32 %v68, %v102
  %v107 = vld [vmem:[%s1] sm:$0xff]
  %v108 = vld [vmem:[%s1 + $0x8] sm:$0xff]
  %v109 = vld [vmem:[%s1 + $0x10] sm:$0xff]
  %v110 = vld [vmem:[%s1 + $0x18] sm:$0xff]
  %v111 = vld [vmem:[%s1 + $0x20] sm:$0xff]
  %v112 = vld [vmem:[%s1 + $0x28] sm:$0xff]
  %v113 = vld [vmem:[%s1 + $0x30] sm:$0xff]
  %v114 = vld [vmem:[%s1 + $0x38] sm:$0xff]
  %v115 = vld [vmem:[%s1 + $0x40] sm:$0xff]
  %v116 = vld [vmem:[%s1 + $0x48] sm:$0xff]
  %v117 = vld [vmem:[%s1 + $0x50] sm:$0xff]
  %v118 = vld [vmem:[%s1 + $0x58] sm:$0xff]
  %v119 = vld [vmem:[%s1 + $0x60] sm:$0xff]
  %v120 = vld [vmem:[%s1 + $0x68] sm:$0xff]
  %v121 = vld [vmem:[%s1 + $0x70] sm:$0xff]
  %v122 = vld [vmem:[%s1 + $0x78] sm:$0xff]
  %v123 = vld [vmem:[%s1 + $0x80] sm:$0xff]
  %v124 = vld [vmem:[%s1 + $0x88] sm:$0xff]
  %v125 = vld [vmem:[%s1 + $0x90] sm:$0xff]
  %v126 = vld [vmem:[%s1 + $0x98] sm:$0xff]
  %v127 = vld [vmem:[%s1 + $0xa0] sm:$0xff]
  %v128 = vld [vmem:[%s1 + $0xa8] sm:$0xff]
  %v129 = vld [vmem:[%s1 + $0xb0] sm:$0xff]
  %v130 = vld [vmem:[%s1 + $0xb8] sm:$0xff]
  %v131 = vld [vmem:[%s1 + $0xc0] sm:$0xff]
  %v132 = vld [vmem:[%s1 + $0xc8] sm:$0xff]
  %v133 = vld [vmem:[%s1 + $0xd0] sm:$0xff]
  %v134 = vld [vmem:[%s1 + $0xd8] sm:$0xff]
  %v135 = vld [vmem:[%s1 + $0xe0] sm:$0xff]
  %v136 = vld [vmem:[%s1 + $0xe8] sm:$0xff]
  %v137 = vld [vmem:[%s1 + $0xf0] sm:$0xff]
  %v138 = vld [vmem:[%s1 + $0xf8] sm:$0xff]
  %v139 = vld [vmem:[%s1 + $0x100] sm:$0xff]
  %v140 = vld [vmem:[%s1 + $0x108] sm:$0xff]
  %v141 = vld [vmem:[%s1 + $0x110] sm:$0xff]
  %v142 = vld [vmem:[%s1 + $0x118] sm:$0xff]
  %v143 = vld [vmem:[%s1 + $0x120] sm:$0xff]
  %v144 = vld [vmem:[%s1 + $0x128] sm:$0xff]
  %v145 = vld [vmem:[%s1 + $0x130] sm:$0xff]
  %v146 = vld [vmem:[%s1 + $0x138] sm:$0xff]
  %v147 = vld [vmem:[%s1 + $0x140] sm:$0xff]
  %v148 = vld [vmem:[%s1 + $0x148] sm:$0xff]
  %v149 = vld [vmem:[%s1 + $0x150] sm:$0xff]
  %v150 = vld [vmem:[%s1 + $0x158] sm:$0xff]
  %v151 = vld [vmem:[%s1 + $0x160] sm:$0xff]
  %v152 = vld [vmem:[%s1 + $0x168] sm:$0xff]
  %v153 = vld [vmem:[%s1 + $0x170] sm:$0xff]
  %v154 = vld [vmem:[%s1 + $0x178] sm:$0xff]
  %v155 = vld [vmem:[%s1 + $0x180] sm:$0xff]
  %v156 = vld [vmem:[%s1 + $0x188] sm:$0xff]
  %v157 = vld [vmem:[%s1 + $0x190] sm:$0xff]
  %v158 = vld [vmem:[%s1 + $0x198] sm:$0xff]
  %v159 = vld [vmem:[%s1 + $0x1a0] sm:$0xff]
  %v160 = vld [vmem:[%s1 + $0x1a8] sm:$0xff]
  %v161 = vld [vmem:[%s1 + $0x1b0] sm:$0xff]
  %v162 = vld [vmem:[%s1 + $0x1b8] sm:$0xff]
  %v163 = vld [vmem:[%s1 + $0x1c0] sm:$0xff]
  %v164 = vld [vmem:[%s1 + $0x1c8] sm:$0xff]
  %v165 = vld [vmem:[%s1 + $0x1d0] sm:$0xff]
  %v166 = vld [vmem:[%s1 + $0x1d8] sm:$0xff]
  %v167 = vld [vmem:[%s1 + $0x1e0] sm:$0xff]
  %v168 = vld [vmem:[%s1 + $0x1e8] sm:$0xff]
  %v169 = vld [vmem:[%s1 + $0x1f0] sm:$0xff]
  %v170 = vld [vmem:[%s1 + $0x1f8] sm:$0xff]
  %173 = vst [vmem:[#allocation1] ss:$2 sm:$0xff] %v105
  %s174 = scalar_lea.vmem [#allocation1], 16
  %175 = vst [vmem:[%s174] ss:$2 sm:$0xff] %v106
  %v176 = vld.sshfl [vmem:[#allocation1] sm:$0xff pattern:$0x75316420]
  %v177 = vld.sshfl [vmem:[#allocation1 + $0x8] sm:$0xff pattern:$0x75316420]
  %v178 = vld.sshfl [vmem:[#allocation1 + $0x10] sm:$0xff pattern:$0x75316420]
  %v179 = vld.sshfl [vmem:[#allocation1 + $0x18] sm:$0xff pattern:$0x75316420]
  %184 = vmatpush.msra.mxu0 %v122
  %185 = vmatpush.msra.mxu0 %v121
  %186 = vmatpush.msra.mxu0 %v120
  %187 = vmatpush.msra.mxu0 %v119
  %188 = vmatpush.msra.mxu0 %v118
  %189 = vmatpush.msra.mxu0 %v117
  %190 = vmatpush.msra.mxu0 %v116
  %191 = vmatpush.msra.mxu0 %v115
  %192 = vmatpush.msra.mxu0 %v114
  %193 = vmatpush.msra.mxu0 %v113
  %194 = vmatpush.msra.mxu0 %v112
  %195 = vmatpush.msra.mxu0 %v111
  %196 = vmatpush.msra.mxu0 %v110
  %197 = vmatpush.msra.mxu0 %v109
  %198 = vmatpush.msra.mxu0 %v108
  %199 = vmatpush.msra.mxu0 %v107
  %200 = vmatmul.f32.gmra.mxu0 %v176
  %v201 = vpop.f32.mrf.mxu0
  %v202 = vadd.f32 0.0, %v201
  %203 = vdwg.mxu0
  %204 = vmatpush.msra.mxu0 %v138
  %205 = vmatpush.msra.mxu0 %v137
  %206 = vmatpush.msra.mxu0 %v136
  %207 = vmatpush.msra.mxu0 %v135
  %208 = vmatpush.msra.mxu0 %v134
  %209 = vmatpush.msra.mxu0 %v133
  %210 = vmatpush.msra.mxu0 %v132
  %211 = vmatpush.msra.mxu0 %v131
  %212 = vmatpush.msra.mxu0 %v130
  %213 = vmatpush.msra.mxu0 %v129
  %214 = vmatpush.msra.mxu0 %v128
  %215 = vmatpush.msra.mxu0 %v127
  %216 = vmatpush.msra.mxu0 %v126
  %217 = vmatpush.msra.mxu0 %v125
  %218 = vmatpush.msra.mxu0 %v124
  %219 = vmatpush.msra.mxu0 %v123
  %220 = vmatmul.f32.gmra.mxu0 %v177
  %v221 = vpop.f32.mrf.mxu0
  %v222 = vadd.f32 %v202, %v221
  %223 = vdwg.mxu0
  %224 = vmatpush.msra.mxu0 %v154
  %225 = vmatpush.msra.mxu0 %v153
  %226 = vmatpush.msra.mxu0 %v152
  %227 = vmatpush.msra.mxu0 %v151
  %228 = vmatpush.msra.mxu0 %v150
  %229 = vmatpush.msra.mxu0 %v149
  %230 = vmatpush.msra.mxu0 %v148
  %231 = vmatpush.msra.mxu0 %v147
  %232 = vmatpush.msra.mxu0 %v146
  %233 = vmatpush.msra.mxu0 %v145
  %234 = vmatpush.msra.mxu0 %v144
  %235 = vmatpush.msra.mxu0 %v143
  %236 = vmatpush.msra.mxu0 %v142
  %237 = vmatpush.msra.mxu0 %v141
  %238 = vmatpush.msra.mxu0 %v140
  %239 = vmatpush.msra.mxu0 %v139
  %240 = vmatmul.f32.gmra.mxu0 %v178
  %v241 = vpop.f32.mrf.mxu0
  %v242 = vadd.f32 %v222, %v241
  %243 = vdwg.mxu0
  %244 = vmatpush.msra.mxu0 %v170
  %245 = vmatpush.msra.mxu0 %v169
  %246 = vmatpush.msra.mxu0 %v168
  %247 = vmatpush.msra.mxu0 %v167
  %248 = vmatpush.msra.mxu0 %v166
  %249 = vmatpush.msra.mxu0 %v165
  %250 = vmatpush.msra.mxu0 %v164
  %251 = vmatpush.msra.mxu0 %v163
  %252 = vmatpush.msra.mxu0 %v162
  %253 = vmatpush.msra.mxu0 %v161
  %254 = vmatpush.msra.mxu0 %v160
  %255 = vmatpush.msra.mxu0 %v159
  %256 = vmatpush.msra.mxu0 %v158
  %257 = vmatpush.msra.mxu0 %v157
  %258 = vmatpush.msra.mxu0 %v156
  %259 = vmatpush.msra.mxu0 %v155
  %260 = vmatmul.f32.gmra.mxu0 %v179
  %v261 = vpop.f32.mrf.mxu0
  %v262 = vadd.f32 %v242, %v261
  %263 = vdwg.mxu0
  %264 = vrot.lane.b32.xlu0 %v262, 9
  %v265 = vpop.permute.xlu0 %264
  %v266 = vld [vmem:[%s2] sm:$0x1]
  %v268 = vperm.slane %v266, 0
  %v270 = vmul.f32 %v265, %v268
  %271 = vrot.lane.b32.xlu0 %v262, 8
  %v272 = vpop.permute.xlu0 %271
  %s273 = scalar_lea.vmem %s2, 1
  %v274 = vld [vmem:[%s273] sm:$0x1]
  %v276 = vperm.slane %v274, 0
  %v278 = vmul.f32 %v272, %v276
  %279 = vrot.lane.b32.xlu0 %v262, 7
  %v280 = vpop.permute.xlu0 %279
  %s281 = scalar_lea.vmem %s2, 2
  %v282 = vld [vmem:[%s281] sm:$0x1]
  %v284 = vperm.slane %v282, 0
  %v286 = vmul.f32 %v280, %v284
  %287 = vrot.lane.b32.xlu0 %v262, 1
  %v288 = vpop.permute.xlu0 %287
  %s289 = scalar_lea.vmem %s2, 3
  %v290 = vld [vmem:[%s289] sm:$0x1]
  %v292 = vperm.slane %v290, 0
  %v294 = vmul.f32 %v288, %v292
  %295 = vrot.lane.b32.xlu0 %v262, 127
  %v296 = vpop.permute.xlu0 %295
  %s297 = scalar_lea.vmem %s2, 5
  %v298 = vld [vmem:[%s297] sm:$0x1]
  %v300 = vperm.slane %v298, 0
  %v302 = vmul.f32 %v296, %v300
  %303 = vrot.lane.b32.xlu0 %v262, 121
  %v304 = vpop.permute.xlu0 %303
  %s305 = scalar_lea.vmem %s2, 6
  %v306 = vld [vmem:[%s305] sm:$0x1]
  %v308 = vperm.slane %v306, 0
  %v310 = vmul.f32 %v304, %v308
  %311 = vrot.lane.b32.xlu0 %v262, 120
  %v312 = vpop.permute.xlu0 %311
  %s313 = scalar_lea.vmem %s2, 7
  %v314 = vld [vmem:[%s313] sm:$0x1]
  %v316 = vperm.slane %v314, 0
  %v318 = vmul.f32 %v312, %v316
  %319 = vrot.lane.b32.xlu0 %v262, 119
  %v320 = vpop.permute.xlu0 %319
  %s321 = scalar_lea.vmem %s2, 8
  %v322 = vld [vmem:[%s321] sm:$0x1]
  %v324 = vperm.slane %v322, 0
  %v326 = vmul.f32 %v320, %v324
  %v328 = vrot.slane %v278, 4
  %v331 = vrot.slane %v294, 4
  %v334 = vrot.slane %v302, 4
  %v337 = vrot.slane %v318, 4
  %v339 = vsel %vm62, %v270, %v328
  %v340 = vsel %vm62, %v286, %v331
  %v341 = vsel %vm62, %v262, %v334
  %v342 = vsel %vm62, %v310, %v337
  %v343 = vld [vmem:[%s3] sm:$0xff]
  %v344 = vld [vmem:[%s4] sm:$0xff]
  %346 = vset.pattern.permute.xlu0 0
  %347 = vperm.xlu0 %346, %v344
  %v348 = vpop.permute.xlu0 %347
  %vm350 = vcmask 293888
  %v352 = vsel %vm350, %v343, 0
  %v355 = vsel %vm62, %v326, 0
  %357 = vmatpush.msra.mxu0 0.0
  %358 = vmatpush.msra.mxu0 0.0
  %359 = vmatpush.msra.mxu0 0.0
  %360 = vmatpush.msra.mxu0 0.0
  %361 = vmatpush.msra.mxu0 0.0
  %362 = vmatpush.msra.mxu0 0.0
  %363 = vmatpush.msra.mxu0 0.0
  %364 = vmatpush.msra.mxu0 0.0
  %365 = vmatpush.msra.mxu0 0.0
  %366 = vmatpush.msra.mxu0 0.0
  %367 = vmatpush.msra.mxu0 0.0
  %368 = vmatpush.msra.mxu0 %v355
  %369 = vmatpush.msra.mxu0 %v342
  %370 = vmatpush.msra.mxu0 %v341
  %371 = vmatpush.msra.mxu0 %v340
  %372 = vmatpush.msra.mxu0 %v339
  %373 = vmatmul.f32.gmra.mxu0 %v352
  %v374 = vpop.f32.mrf.mxu0
  %v375 = vadd.f32 %v348, %v374
  %376 = vdwg.mxu0
  %v377 = vmax.f32 %v375, 0.0
  %378 = vrot.lane.b32.xlu0 %v377, 9
  %v379 = vpop.permute.xlu0 %378
  %v380 = vmul.f32 %v379, %v268
  %381 = vrot.lane.b32.xlu0 %v377, 8
  %v382 = vpop.permute.xlu0 %381
  %v383 = vmul.f32 %v382, %v276
  %384 = vrot.lane.b32.xlu0 %v377, 7
  %v385 = vpop.permute.xlu0 %384
  %v386 = vmul.f32 %v385, %v284
  %387 = vrot.lane.b32.xlu0 %v377, 1
  %v388 = vpop.permute.xlu0 %387
  %v389 = vmul.f32 %v388, %v292
  %390 = vrot.lane.b32.xlu0 %v377, 127
  %v391 = vpop.permute.xlu0 %390
  %v392 = vmul.f32 %v391, %v300
  %393 = vrot.lane.b32.xlu0 %v377, 121
  %v394 = vpop.permute.xlu0 %393
  %v395 = vmul.f32 %v394, %v308
  %396 = vrot.lane.b32.xlu0 %v377, 120
  %v397 = vpop.permute.xlu0 %396
  %v398 = vmul.f32 %v397, %v316
  %399 = vrot.lane.b32.xlu0 %v377, 119
  %v400 = vpop.permute.xlu0 %399
  %v401 = vmul.f32 %v400, %v324
  %v402 = vld [vmem:[%s5] sm:$0xff]
  %v403 = vld [vmem:[%s6] sm:$0xff]
  %405 = vset.pattern.permute.xlu0 0
  %406 = vperm.xlu0 %405, %v403
  %v407 = vpop.permute.xlu0 %406
  %vm409 = vcmask 588800
  %v411 = vsel %vm409, %v402, 0
  %413 = vmatpush.msra.mxu0 0.0
  %414 = vmatpush.msra.mxu0 0.0
  %415 = vmatpush.msra.mxu0 0.0
  %416 = vmatpush.msra.mxu0 0.0
  %417 = vmatpush.msra.mxu0 0.0
  %418 = vmatpush.msra.mxu0 0.0
  %419 = vmatpush.msra.mxu0 0.0
  %420 = vmatpush.msra.mxu0 %v401
  %421 = vmatpush.msra.mxu0 %v398
  %422 = vmatpush.msra.mxu0 %v395
  %423 = vmatpush.msra.mxu0 %v392
  %424 = vmatpush.msra.mxu0 %v377
  %425 = vmatpush.msra.mxu0 %v389
  %426 = vmatpush.msra.mxu0 %v386
  %427 = vmatpush.msra.mxu0 %v383
  %428 = vmatpush.msra.mxu0 %v380
  %429 = vmatmul.f32.gmra.mxu0 %v411
  %v430 = vpop.f32.mrf.mxu0
  %v431 = vadd.f32 %v407, %v430
  %432 = vdwg.mxu0
  %v433 = vmax.f32 %v431, 0.0
  %434 = vst [vmem:[%s7] sm:$0xff] %v433
  // Predicated region
  $region30: #{down_forward.1} parent=0 // pred_check
    _
  $region31: #{down_forward.1} parent=0 // pred_check_branch
    %436 = sbr.rel (0) target = $region33
  $region32: #{down_forward.1} parent=0 // pred_region
    _
  $region33: #{down_forward.1} parent=0 // pred_fallthru
    _
  // Predicated region
  $region34: #{down_forward.1} parent=0 // pred_check
    _
  $region35: #{down_forward.1} parent=0 // pred_check_branch
    %438 = sbr.rel (0) target = $region37
  $region36: #{down_forward.1} parent=0 // pred_region
    _
  $region37: #{down_forward.1} parent=0 // pred_fallthru
    _

</llo_original>
